<compile_context>
chip_gen: v6e
topology: v6e:2x2x1
jax: 0.10.0
libtpu: 0.0.40
codegen_flags: <defaults>
</compile_context>

<pallas_src>
import jax
import jax.numpy as jnp
from jax.experimental import pallas as pl
from jax.experimental.pallas import tpu as pltpu

NEG_SLOPE = 0.2


def _leaky_relu(x, ns=NEG_SLOPE):
    # For 0 < ns < 1, max(x, ns*x) == LeakyReLU(x); 2 VALU ops vs cmp+mul+select.
    return jnp.maximum(x, ns * x)


def wdisc_kernel(x_ref,
                 w0_ref, b0_ref,
                 w1_ref, b1_ref,
                 w2_ref, b2_ref,
                 wo_ref, bo_ref,
                 o_ref):
    """One batch tile.  Activations are kept as (features, batch_tile) so the
    final store is a lane-dense (1, batch_tile) row."""
    # Cast to bf16 inside the kernel (VPU, hidden under the x DMA) instead of
    # paying a separate HBM round trip for a wrapper-side convert.
    x_bf = x_ref[...].astype(jnp.bfloat16)                  # (tile, 128)
    w0_bf = w0_ref[...].astype(jnp.bfloat16)                # (128, 128)

    # Layer 0: contract on the feature dim -> (128, tile) f32.  Trans-B
    # dot_general form, so the MXU consumes x without an explicit transpose.
    h = jnp.einsum("oi,bi->ob", w0_bf, x_bf,
                   preferred_element_type=jnp.float32)
    h = _leaky_relu(h + b0_ref[...])                        # bias (128,1) f32

    # Layer 1: (64,128) @ (128,tile) -> (64, tile)
    h = jnp.dot(w1_ref[...].astype(jnp.bfloat16), h.astype(jnp.bfloat16),
                preferred_element_type=jnp.float32)
    h = _leaky_relu(h + b1_ref[...])

    # Layer 2: (32,64) @ (64,tile) -> (32, tile)
    h = jnp.dot(w2_ref[...].astype(jnp.bfloat16), h.astype(jnp.bfloat16),
                preferred_element_type=jnp.float32)
    h = _leaky_relu(h + b2_ref[...])

    # Output Linear(32 -> 1): VPU multiply + sublane reduce (skip the M=1 MXU
    # matmul), then Sigmoid via EUP exp + approximate EUP reciprocal.
    logits = jnp.sum(h * wo_ref[...], axis=0, keepdims=True) + bo_ref[...]
    o_ref[...] = pl.reciprocal(1.0 + jnp.exp(-logits), approx=True)


def _pick_batch_tile(B, requested=None, max_tile=4096):
    """tile = B for small batches (one grid step); otherwise the largest
    128-multiple divisor of B that is <= max_tile (keeps the f32 x buffers
    under v5e's 16 MiB scoped-VMEM default without a vmem_limit override).
    On v7x, pass batch_tile explicitly to keep the grid a multiple of 2 TCs."""
    if requested is not None:
        return min(requested, B)
    if B <= max_tile:
        return B
    for cand in range(max_tile - max_tile % 128, 127, -128):
        if B % cand == 0:
            return cand
    return B  # no suitable divisor; fall back to a single tile


def wdiscriminator_forward(x, params, *, batch_tile=None):
    """x: (B, in_features) f32.  params: PyTorch-layout [(W(out,in), b(out,)),...]."""
    B, F = x.shape
    tile = _pick_batch_tile(B, batch_tile)
    assert tile % 8 == 0, "batch tile must be a multiple of 8"
    assert B % tile == 0, "batch must be a multiple of the batch tile"
    # Lane-dense (1, tile) output block: minor dim must be a multiple of 128
    # unless the block covers the whole output row.
    assert tile == B or tile % 128 == 0, "batch tile must be a multiple of 128"

    (w0, b0), (w1, b1), (w2, b2), (wo, bo) = params

    # Biases as f32 columns (broadcast over the lane/batch dim in-kernel).
    b0c, b1c, b2c = (b.reshape(-1, 1).astype(jnp.float32) for b in (b0, b1, b2))
    wo_col = wo.reshape(-1, 1).astype(jnp.float32)      # (32, 1)
    bo_c = bo.reshape(1, 1).astype(jnp.float32)         # (1, 1)

    num_tiles = B // tile
    grid = (num_tiles,)
    const = lambda i: (0, 0)   # weights/biases: same block every step (DMA'd once)

    # x is the only streamed operand: deepen its pipeline when the grid is
    # long enough to profit from it; otherwise keep the default double buffer.
    if num_tiles >= 3:
        x_spec = pl.BlockSpec((tile, F), lambda i: (i, 0),
                              pipeline_mode=pl.Buffered(3))
    else:
        x_spec = pl.BlockSpec((tile, F), lambda i: (i, 0))

    in_specs = [
        x_spec,
        pl.BlockSpec(w0.shape, const), pl.BlockSpec(b0c.shape, const),
        pl.BlockSpec(w1.shape, const), pl.BlockSpec(b1c.shape, const),
        pl.BlockSpec(w2.shape, const), pl.BlockSpec(b2c.shape, const),
        pl.BlockSpec(wo_col.shape, const), pl.BlockSpec(bo_c.shape, const),
    ]
    out_specs = pl.BlockSpec((1, tile), lambda i: (0, i))    # lane-dense row

    out_row = pl.pallas_call(
        wdisc_kernel,
        out_shape=jax.ShapeDtypeStruct((1, B), jnp.float32),
        grid=grid,
        in_specs=in_specs,
        out_specs=out_specs,
        compiler_params=pltpu.CompilerParams(
            dimension_semantics=("parallel",)),
    )(x.astype(jnp.float32),
      w0.astype(jnp.float32), b0c,
      w1.astype(jnp.float32), b1c,
      w2.astype(jnp.float32), b2c,
      wo_col, bo_c)

    return out_row.reshape(B, 1)


def init_params(key, in_features, layers):
    """PyTorch nn.Linear-style init: W (out, in), b (out,), U(-1/sqrt(fan_in),+)."""
    dims = [in_features] + list(layers) + [1]
    params = []
    for i in range(len(dims) - 1):
        key, kw, kb = jax.random.split(key, 3)
        bound = 1.0 / (dims[i] ** 0.5)
        w = jax.random.uniform(kw, (dims[i + 1], dims[i]),
                               jnp.float32, -bound, bound)
        b = jax.random.uniform(kb, (dims[i + 1],),
                               jnp.float32, -bound, bound)
        params.append((w, b))
    return params


def reference_forward(x, params):
    (w0, b0), (w1, b1), (w2, b2), (wo, bo) = params
    h = _leaky_relu(x @ w0.T + b0)
    h = _leaky_relu(h @ w1.T + b1)
    h = _leaky_relu(h @ w2.T + b2)
    return jax.nn.sigmoid(h @ wo.T + bo)


if __name__ == "__main__":
    in_features = 128
    layers = [128, 64, 32]          # n_layers = 2 -> layers has 3 entries
    batch = 256                     # small demo shape; tile = B -> grid=(1,)

    key = jax.random.PRNGKey(0)
    key, kx = jax.random.split(key)
    x = jax.random.normal(kx, (batch, in_features), jnp.float32)
    params = init_params(key, in_features, layers)

    out = wdiscriminator_forward(x, params)
    out = jax.block_until_ready(out)

    ref = reference_forward(x, params)
    assert out.shape == (batch, 1)
    max_err = float(jnp.max(jnp.abs(out - ref)))
    # bf16 MXU operands with f32 accumulation + approx reciprocal in sigmoid
    # -> loose tolerance vs the pure-f32 reference.
    assert max_err < 2e-2, f"mismatch vs reference: max abs err = {max_err}"

    print("KERNEL_OK")
</pallas_src>

<mosaic_0001>
module attributes {stable_mosaic.version = 11 : i64} {
  func.func @wdisc_kernel(%arg0: i32, %arg1: memref<256x128xf32, #tpu.memory_space<vmem>>, %arg2: memref<128x128xf32, #tpu.memory_space<vmem>>, %arg3: memref<128x1xf32, #tpu.memory_space<vmem>>, %arg4: memref<64x128xf32, #tpu.memory_space<vmem>>, %arg5: memref<64x1xf32, #tpu.memory_space<vmem>>, %arg6: memref<32x64xf32, #tpu.memory_space<vmem>>, %arg7: memref<32x1xf32, #tpu.memory_space<vmem>>, %arg8: memref<32x1xf32, #tpu.memory_space<vmem>>, %arg9: memref<1x1xf32, #tpu.memory_space<vmem>>, %arg10: memref<1x256xf32, #tpu.memory_space<vmem>>) attributes {dimension_semantics = [#tpu.dimension_semantics<parallel>], iteration_bounds = array<i64: 1>, scalar_prefetch = 0 : i64, scratch_operands = 0 : i64, tpu.core_type = #tpu.core_type<tc>, window_params = [{transform_indices = @transform_0, window_bounds = array<i64: 256, 128>}, {pipeline_mode = #tpu.pipeline_mode<synchronous>, transform_indices = @transform_1, window_bounds = array<i64: 128, 128>}, {pipeline_mode = #tpu.pipeline_mode<synchronous>, transform_indices = @transform_2, window_bounds = array<i64: 128, 1>}, {pipeline_mode = #tpu.pipeline_mode<synchronous>, transform_indices = @transform_3, window_bounds = array<i64: 64, 128>}, {pipeline_mode = #tpu.pipeline_mode<synchronous>, transform_indices = @transform_4, window_bounds = array<i64: 64, 1>}, {pipeline_mode = #tpu.pipeline_mode<synchronous>, transform_indices = @transform_5, window_bounds = array<i64: 32, 64>}, {pipeline_mode = #tpu.pipeline_mode<synchronous>, transform_indices = @transform_6, window_bounds = array<i64: 32, 1>}, {pipeline_mode = #tpu.pipeline_mode<synchronous>, transform_indices = @transform_7, window_bounds = array<i64: 32, 1>}, {pipeline_mode = #tpu.pipeline_mode<synchronous>, transform_indices = @transform_8, window_bounds = array<i64: 1, 1>}, {transform_indices = @transform_9, window_bounds = array<i64: 1, 256>}]} {
    %c0 = arith.constant 0 : index
    %c0_0 = arith.constant 0 : index
    %0 = vector.load %arg1[%c0, %c0_0] : memref<256x128xf32, #tpu.memory_space<vmem>>, vector<256x128xf32>
    %1 = arith.truncf %0 : vector<256x128xf32> to vector<256x128xbf16>
    %c0_1 = arith.constant 0 : index
    %c0_2 = arith.constant 0 : index
    %2 = vector.load %arg2[%c0_1, %c0_2] : memref<128x128xf32, #tpu.memory_space<vmem>>, vector<128x128xf32>
    %3 = arith.truncf %2 : vector<128x128xf32> to vector<128x128xbf16>
    "tpu.trace_start"() <{level = 10 : i32, message = "oi,bi->ob"}> : () -> ()
    %cst = arith.constant dense<0.000000e+00> : vector<128x256xf32>
    %4 = tpu.matmul %3, %1, %cst {dimension_numbers = #tpu.dot_dimension_numbers<[1], [1], [0], [0], [0, 0, 1, 0], [], []>} : vector<128x128xbf16>, vector<256x128xbf16>, vector<128x256xf32> -> vector<128x256xf32>
    "tpu.trace_stop"() : () -> ()
    %c0_3 = arith.constant 0 : index
    %c0_4 = arith.constant 0 : index
    %5 = vector.load %arg3[%c0_3, %c0_4] : memref<128x1xf32, #tpu.memory_space<vmem>>, vector<128x1xf32>
    %6 = vector.broadcast %5 : vector<128x1xf32> to vector<128x256xf32>
    %7 = arith.addf %4, %6 : vector<128x256xf32>
    %cst_5 = arith.constant 2.000000e-01 : f32
    %8 = vector.broadcast %cst_5 : f32 to vector<128x256xf32>
    %9 = arith.mulf %8, %7 : vector<128x256xf32>
    %10 = arith.maximumf %7, %9 : vector<128x256xf32>
    %c0_6 = arith.constant 0 : index
    %c0_7 = arith.constant 0 : index
    %11 = vector.load %arg4[%c0_6, %c0_7] : memref<64x128xf32, #tpu.memory_space<vmem>>, vector<64x128xf32>
    %12 = arith.truncf %11 : vector<64x128xf32> to vector<64x128xbf16>
    %13 = arith.truncf %10 : vector<128x256xf32> to vector<128x256xbf16>
    %cst_8 = arith.constant dense<0.000000e+00> : vector<64x256xf32>
    %14 = tpu.matmul %12, %13, %cst_8 {dimension_numbers = #tpu.dot_dimension_numbers<[1], [0], [0], [1], [0, 0, 1, 1], [], []>} : vector<64x128xbf16>, vector<128x256xbf16>, vector<64x256xf32> -> vector<64x256xf32>
    %c0_9 = arith.constant 0 : index
    %c0_10 = arith.constant 0 : index
    %15 = vector.load %arg5[%c0_9, %c0_10] : memref<64x1xf32, #tpu.memory_space<vmem>>, vector<64x1xf32>
    %16 = vector.broadcast %15 : vector<64x1xf32> to vector<64x256xf32>
    %17 = arith.addf %14, %16 : vector<64x256xf32>
    %cst_11 = arith.constant 2.000000e-01 : f32
    %18 = vector.broadcast %cst_11 : f32 to vector<64x256xf32>
    %19 = arith.mulf %18, %17 : vector<64x256xf32>
    %20 = arith.maximumf %17, %19 : vector<64x256xf32>
    %c0_12 = arith.constant 0 : index
    %c0_13 = arith.constant 0 : index
    %21 = vector.load %arg6[%c0_12, %c0_13] : memref<32x64xf32, #tpu.memory_space<vmem>>, vector<32x64xf32>
    %22 = arith.truncf %21 : vector<32x64xf32> to vector<32x64xbf16>
    %23 = arith.truncf %20 : vector<64x256xf32> to vector<64x256xbf16>
    %cst_14 = arith.constant dense<0.000000e+00> : vector<32x256xf32>
    %24 = tpu.matmul %22, %23, %cst_14 {dimension_numbers = #tpu.dot_dimension_numbers<[1], [0], [0], [1], [0, 0, 1, 1], [], []>} : vector<32x64xbf16>, vector<64x256xbf16>, vector<32x256xf32> -> vector<32x256xf32>
    %c0_15 = arith.constant 0 : index
    %c0_16 = arith.constant 0 : index
    %25 = vector.load %arg7[%c0_15, %c0_16] : memref<32x1xf32, #tpu.memory_space<vmem>>, vector<32x1xf32>
    %26 = vector.broadcast %25 : vector<32x1xf32> to vector<32x256xf32>
    %27 = arith.addf %24, %26 : vector<32x256xf32>
    %cst_17 = arith.constant 2.000000e-01 : f32
    %28 = vector.broadcast %cst_17 : f32 to vector<32x256xf32>
    %29 = arith.mulf %28, %27 : vector<32x256xf32>
    %30 = arith.maximumf %27, %29 : vector<32x256xf32>
    %c0_18 = arith.constant 0 : index
    %c0_19 = arith.constant 0 : index
    %31 = vector.load %arg8[%c0_18, %c0_19] : memref<32x1xf32, #tpu.memory_space<vmem>>, vector<32x1xf32>
    %32 = vector.broadcast %31 : vector<32x1xf32> to vector<32x256xf32>
    %33 = arith.mulf %30, %32 : vector<32x256xf32>
    %cst_20 = arith.constant dense<0.000000e+00> : vector<256xf32>
    %34 = vector.multi_reduction <add>, %33, %cst_20 [0] : vector<32x256xf32> to vector<256xf32>
    %35 = vector.shape_cast %34 : vector<256xf32> to vector<1x256xf32>
    %c0_21 = arith.constant 0 : index
    %c0_22 = arith.constant 0 : index
    %36 = vector.load %arg9[%c0_21, %c0_22] : memref<1x1xf32, #tpu.memory_space<vmem>>, vector<1x1xf32>
    %37 = vector.broadcast %36 : vector<1x1xf32> to vector<1x256xf32>
    %38 = arith.addf %35, %37 : vector<1x256xf32>
    %cst_23 = arith.constant 0.000000e+00 : f32
    %39 = vector.broadcast %cst_23 : f32 to vector<1x256xf32>
    %40 = arith.subf %39, %38 : vector<1x256xf32>
    %41 = math.exp %40 : vector<1x256xf32>
    %cst_24 = arith.constant 1.000000e+00 : f32
    %42 = vector.broadcast %cst_24 : f32 to vector<1x256xf32>
    %43 = arith.addf %42, %41 : vector<1x256xf32>
    %44 = tpu.reciprocal %43 {approx = true} : vector<1x256xf32> -> vector<1x256xf32>
    %c0_25 = arith.constant 0 : index
    %c0_26 = arith.constant 0 : index
    %45 = vector.load %arg10[%c0_25, %c0_26] : memref<1x256xf32, #tpu.memory_space<vmem>>, vector<1x256xf32>
    tpu.vector_store %arg10[%c0_25, %c0_26], %44 {strides = array<i32>} : memref<1x256xf32, #tpu.memory_space<vmem>>, vector<1x256xf32>,
    return
  }
  func.func @transform_0(%arg0: i32) -> (i32, i32) {
    %c0_i32 = arith.constant 0 : i32
    %c0_i32_0 = arith.constant 0 : i32
    return %arg0, %c0_i32 : i32, i32
  }
  func.func @transform_1(%arg0: i32) -> (i32, i32) {
    %c0_i32 = arith.constant 0 : i32
    %c0_i32_0 = arith.constant 0 : i32
    %c0_i32_1 = arith.constant 0 : i32
    return %c0_i32, %c0_i32_0 : i32, i32
  }
  func.func @transform_2(%arg0: i32) -> (i32, i32) {
    %c0_i32 = arith.constant 0 : i32
    %c0_i32_0 = arith.constant 0 : i32
    %c0_i32_1 = arith.constant 0 : i32
    return %c0_i32, %c0_i32_0 : i32, i32
  }
  func.func @transform_3(%arg0: i32) -> (i32, i32) {
    %c0_i32 = arith.constant 0 : i32
    %c0_i32_0 = arith.constant 0 : i32
    %c0_i32_1 = arith.constant 0 : i32
    return %c0_i32, %c0_i32_0 : i32, i32
  }
  func.func @transform_4(%arg0: i32) -> (i32, i32) {
    %c0_i32 = arith.constant 0 : i32
    %c0_i32_0 = arith.constant 0 : i32
    %c0_i32_1 = arith.constant 0 : i32
    return %c0_i32, %c0_i32_0 : i32, i32
  }
  func.func @transform_5(%arg0: i32) -> (i32, i32) {
    %c0_i32 = arith.constant 0 : i32
    %c0_i32_0 = arith.constant 0 : i32
    %c0_i32_1 = arith.constant 0 : i32
    return %c0_i32, %c0_i32_0 : i32, i32
  }
  func.func @transform_6(%arg0: i32) -> (i32, i32) {
    %c0_i32 = arith.constant 0 : i32
    %c0_i32_0 = arith.constant 0 : i32
    %c0_i32_1 = arith.constant 0 : i32
    return %c0_i32, %c0_i32_0 : i32, i32
  }
  func.func @transform_7(%arg0: i32) -> (i32, i32) {
    %c0_i32 = arith.constant 0 : i32
    %c0_i32_0 = arith.constant 0 : i32
    %c0_i32_1 = arith.constant 0 : i32
    return %c0_i32, %c0_i32_0 : i32, i32
  }
  func.func @transform_8(%arg0: i32) -> (i32, i32) {
    %c0_i32 = arith.constant 0 : i32
    %c0_i32_0 = arith.constant 0 : i32
    %c0_i32_1 = arith.constant 0 : i32
    return %c0_i32, %c0_i32_0 : i32, i32
  }
  func.func @transform_9(%arg0: i32) -> (i32, i32) {
    %c0_i32 = arith.constant 0 : i32
    %c0_i32_0 = arith.constant 0 : i32
    return %c0_i32, %arg0 : i32, i32
  }
}

</mosaic_0001>

<llo_original>
// kernel: tpu_custom_call.1
$region0: #{tpu_custom_call.1}
  #allocation0 [shape = 'u32[]', space=smem, size = 0x4, offset = 0x4, fixed_abs, tag = 'smem constant byte address 0x4 - core index']
  #allocation1 [shape = 'u32[144,128]{1,0:T(1,128)}', space=vmem, size = 0x12000, scoped, tag = 'internal scratch']
  #allocation2 [shape = 'f32[1,1]{1,0:T(1,128)S(1)}', space=vmem, size = 0x200, scoped, tag = 'scoped memory for tpu_custom_call.1']
  %s0 = inlined_call_operand.vmem [shape: f32[256,128], index: 0, kind: input, shape index: {}]
  %s1 = inlined_call_operand.hbm [shape: f32[128,128], index: 1, kind: input, shape index: {}]
  %s2 = inlined_call_operand.vmem [shape: f32[128,1], index: 2, kind: input, shape index: {}]
  %s3 = inlined_call_operand.hbm [shape: f32[64,128], index: 3, kind: input, shape index: {}]
  %s4 = inlined_call_operand.vmem [shape: f32[64,1], index: 4, kind: input, shape index: {}]
  %s5 = inlined_call_operand.hbm [shape: f32[32,64], index: 5, kind: input, shape index: {}]
  %s6 = inlined_call_operand.vmem [shape: f32[32,1], index: 6, kind: input, shape index: {}]
  %s7 = inlined_call_operand.vmem [shape: f32[32,1], index: 7, kind: input, shape index: {}]
  %s8 = inlined_call_operand.<no memory space> [shape: f32[1,1], index: 8, kind: input, shape index: {}]
  %s9 = inlined_call_operand.hbm [shape: f32[1,256], index: 9, kind: output, shape index: {}]
  %s10 = sld [smem:[#allocation0]]
  $region58: #{tpu_custom_call.1} parent=0
    _
  %s12 = ssub.s32 1, %s10
  %s13 = scalar_select 0, %s12, %s10
  %v14 = vstv %s8
  %15 = vst [vmem:[#allocation2] sm:$0x1] %v14
  $region1: #{tpu_custom_call.1} parent=0
    #allocation3 [shape = 'u8[65536]{0}', space=vmem, size = 0x10000, scoped, tag = 'input window, operand 1, single buffered']
    #allocation4 [shape = 's32[1]{0}', space=sflag, size = 0x4, scoped, tag = 'scoped memory for tpu_custom_call.1']
    #allocation5 [shape = 's32[1]{0}', space=sflag, size = 0x4, scoped, tag = 'scoped memory for tpu_custom_call.1']
    #allocation6 [shape = 'u8[32768]{0}', space=vmem, size = 0x8000, scoped, tag = 'input window, operand 3, single buffered']
    #allocation7 [shape = 's32[1]{0}', space=sflag, size = 0x4, scoped, tag = 'scoped memory for tpu_custom_call.1']
    #allocation8 [shape = 'u8[16384]{0}', space=vmem, size = 0x4000, scoped, tag = 'input window, operand 5, single buffered']
    #allocation9 [shape = 'u8[1024]{0}', space=vmem, size = 0x400, scoped, tag = 'output window, operand 0, single buffered']
    %16 = vsyncpa [#allocation4], 0
    %17 = vsyncpa [#allocation7], 0
    %18 = vsyncpa [#allocation5], 0
    // Predicated region
    $region2: #{tpu_custom_call.1} parent=1 // pred_check
      _
    $region3: #{tpu_custom_call.1} parent=1 // pred_check_branch
      %20 = sbr.rel (0) target = $region5
    $region4: #{tpu_custom_call.1} parent=1 // pred_region
      _
    $region5: #{tpu_custom_call.1} parent=1 // pred_fallthru
      _
    // Predicated region
    $region6: #{tpu_custom_call.1} parent=1 // pred_check
      _
    $region7: #{tpu_custom_call.1} parent=1 // pred_check_branch
      %22 = sbr.rel (0) target = $region9
    $region8: #{tpu_custom_call.1} parent=1 // pred_region
      %s24 = ssub.s32 2048, 2048
      %25 = vsyncadd [#allocation4], %s24
      %s26 = sshll.u32 [#allocation3], 4
      %s27 = int_to_ptr.vmem [resolvable:$true] %s26
      %32 = dma.hbm_to_vmem [thread:$0]  %s1, 2048, %s27, [#allocation4], 128, 128, 8
    $region9: #{tpu_custom_call.1} parent=1 // pred_fallthru
      _
    // Predicated region
    $region10: #{tpu_custom_call.1} parent=1 // pred_check
      _
    $region11: #{tpu_custom_call.1} parent=1 // pred_check_branch
      %34 = sbr.rel (0) target = $region13
    $region12: #{tpu_custom_call.1} parent=1 // pred_region
      _
    $region13: #{tpu_custom_call.1} parent=1 // pred_fallthru
      _
    // Predicated region
    $region14: #{tpu_custom_call.1} parent=1 // pred_check
      _
    $region15: #{tpu_custom_call.1} parent=1 // pred_check_branch
      %36 = sbr.rel (0) target = $region17
    $region16: #{tpu_custom_call.1} parent=1 // pred_region
      %s38 = ssub.s32 1024, 1024
      %39 = vsyncadd [#allocation7], %s38
      %s40 = sshll.u32 [#allocation6], 4
      %s41 = int_to_ptr.vmem [resolvable:$true] %s40
      %46 = dma.hbm_to_vmem [thread:$0]  %s3, 1024, %s41, [#allocation7], 128, 128, 8
    $region17: #{tpu_custom_call.1} parent=1 // pred_fallthru
      _
    // Predicated region
    $region18: #{tpu_custom_call.1} parent=1 // pred_check
      _
    $region19: #{tpu_custom_call.1} parent=1 // pred_check_branch
      %48 = sbr.rel (0) target = $region21
    $region20: #{tpu_custom_call.1} parent=1 // pred_region
      _
    $region21: #{tpu_custom_call.1} parent=1 // pred_fallthru
      _
    // Predicated region
    $region22: #{tpu_custom_call.1} parent=1 // pred_check
      _
    $region23: #{tpu_custom_call.1} parent=1 // pred_check_branch
      %50 = sbr.rel (0) target = $region25
    $region24: #{tpu_custom_call.1} parent=1 // pred_region
      %s52 = ssub.s32 512, 512
      %53 = vsyncadd [#allocation7], %s52
      %s54 = sshll.u32 [#allocation8], 4
      %s55 = int_to_ptr.vmem [resolvable:$true] %s54
      %60 = dma.hbm_to_vmem [thread:$0]  %s5, 512, %s55, [#allocation7], 128, 128, 8
    $region25: #{tpu_custom_call.1} parent=1 // pred_fallthru
      _
    // Predicated region
    $region26: #{tpu_custom_call.1} parent=1 // pred_check
      _
    $region27: #{tpu_custom_call.1} parent=1 // pred_check_branch
      %62 = sbr.rel (0) target = $region29
    $region28: #{tpu_custom_call.1} parent=1 // pred_region
      _
    $region29: #{tpu_custom_call.1} parent=1 // pred_fallthru
      _
    // Predicated region
    $region30: #{tpu_custom_call.1} parent=1 // pred_check
      _
    $region31: #{tpu_custom_call.1} parent=1 // pred_check_branch
      %64 = sbr.rel (0) target = $region33
    $region32: #{tpu_custom_call.1} parent=1 // pred_region
      _
    $region33: #{tpu_custom_call.1} parent=1 // pred_fallthru
      _
    // Predicated region
    $region34: #{tpu_custom_call.1} parent=1 // pred_check
      _
    $region35: #{tpu_custom_call.1} parent=1 // pred_check_branch
      %66 = sbr.rel (0) target = $region37
    $region36: #{tpu_custom_call.1} parent=1 // pred_region
      _
    $region37: #{tpu_custom_call.1} parent=1 // pred_fallthru
      _
    // Predicated region
    $region38: #{tpu_custom_call.1} parent=1 // pred_check
      _
    $region39: #{tpu_custom_call.1} parent=1 // pred_check_branch
      %68 = sbr.rel (0) target = $region41
    $region40: #{tpu_custom_call.1} parent=1 // pred_region
      %69 = dma.done [#allocation4], 2048
    $region41: #{tpu_custom_call.1} parent=1 // pred_fallthru
      _
    // Predicated region
    $region42: #{tpu_custom_call.1} parent=1 // pred_check
      _
    $region43: #{tpu_custom_call.1} parent=1 // pred_check_branch
      %71 = sbr.rel (0) target = $region45
    $region44: #{tpu_custom_call.1} parent=1 // pred_region
      %72 = dma.done [#allocation7], 1024
    $region45: #{tpu_custom_call.1} parent=1 // pred_fallthru
      _
    // Predicated region
    $region46: #{tpu_custom_call.1} parent=1 // pred_check
      _
    $region47: #{tpu_custom_call.1} parent=1 // pred_check_branch
      %74 = sbr.rel (0) target = $region49
    $region48: #{tpu_custom_call.1} parent=1 // pred_region
      %75 = dma.done [#allocation7], 512
    $region49: #{tpu_custom_call.1} parent=1 // pred_fallthru
      _
    %v77 = vld [vmem:[%s0] sm:$0xff]
    %v78 = vld [vmem:[%s0 + $0x8] sm:$0xff]
    %v79 = vld [vmem:[%s0 + $0x10] sm:$0xff]
    %v80 = vld [vmem:[%s0 + $0x18] sm:$0xff]
    %v81 = vld [vmem:[%s0 + $0x20] sm:$0xff]
    %v82 = vld [vmem:[%s0 + $0x28] sm:$0xff]
    %v83 = vld [vmem:[%s0 + $0x30] sm:$0xff]
    %v84 = vld [vmem:[%s0 + $0x38] sm:$0xff]
    %v85 = vld [vmem:[%s0 + $0x40] sm:$0xff]
    %v86 = vld [vmem:[%s0 + $0x48] sm:$0xff]
    %v87 = vld [vmem:[%s0 + $0x50] sm:$0xff]
    %v88 = vld [vmem:[%s0 + $0x58] sm:$0xff]
    %v89 = vld [vmem:[%s0 + $0x60] sm:$0xff]
    %v90 = vld [vmem:[%s0 + $0x68] sm:$0xff]
    %v91 = vld [vmem:[%s0 + $0x70] sm:$0xff]
    %v92 = vld [vmem:[%s0 + $0x78] sm:$0xff]
    %v93 = vld [vmem:[%s0 + $0x80] sm:$0xff]
    %v94 = vld [vmem:[%s0 + $0x88] sm:$0xff]
    %v95 = vld [vmem:[%s0 + $0x90] sm:$0xff]
    %v96 = vld [vmem:[%s0 + $0x98] sm:$0xff]
    %v97 = vld [vmem:[%s0 + $0xa0] sm:$0xff]
    %v98 = vld [vmem:[%s0 + $0xa8] sm:$0xff]
    %v99 = vld [vmem:[%s0 + $0xb0] sm:$0xff]
    %v100 = vld [vmem:[%s0 + $0xb8] sm:$0xff]
    %v101 = vld [vmem:[%s0 + $0xc0] sm:$0xff]
    %v102 = vld [vmem:[%s0 + $0xc8] sm:$0xff]
    %v103 = vld [vmem:[%s0 + $0xd0] sm:$0xff]
    %v104 = vld [vmem:[%s0 + $0xd8] sm:$0xff]
    %v105 = vld [vmem:[%s0 + $0xe0] sm:$0xff]
    %v106 = vld [vmem:[%s0 + $0xe8] sm:$0xff]
    %v107 = vld [vmem:[%s0 + $0xf0] sm:$0xff]
    %v108 = vld [vmem:[%s0 + $0xf8] sm:$0xff]
    %v109 = vpack.c.bf16 %v78, %v77
    %v110 = vpack.c.bf16 %v80, %v79
    %v111 = vpack.c.bf16 %v82, %v81
    %v112 = vpack.c.bf16 %v84, %v83
    %v113 = vpack.c.bf16 %v86, %v85
    %v114 = vpack.c.bf16 %v88, %v87
    %v115 = vpack.c.bf16 %v90, %v89
    %v116 = vpack.c.bf16 %v92, %v91
    %v117 = vpack.c.bf16 %v94, %v93
    %v118 = vpack.c.bf16 %v96, %v95
    %v119 = vpack.c.bf16 %v98, %v97
    %v120 = vpack.c.bf16 %v100, %v99
    %v121 = vpack.c.bf16 %v102, %v101
    %v122 = vpack.c.bf16 %v104, %v103
    %v123 = vpack.c.bf16 %v106, %v105
    %v124 = vpack.c.bf16 %v108, %v107
    %v125 = vld [vmem:[#allocation3] sm:$0xff]
    %v126 = vld [vmem:[#allocation3 + $0x8] sm:$0xff]
    %v127 = vld [vmem:[#allocation3 + $0x10] sm:$0xff]
    %v128 = vld [vmem:[#allocation3 + $0x18] sm:$0xff]
    %v129 = vld [vmem:[#allocation3 + $0x20] sm:$0xff]
    %v130 = vld [vmem:[#allocation3 + $0x28] sm:$0xff]
    %v131 = vld [vmem:[#allocation3 + $0x30] sm:$0xff]
    %v132 = vld [vmem:[#allocation3 + $0x38] sm:$0xff]
    %v133 = vld [vmem:[#allocation3 + $0x40] sm:$0xff]
    %v134 = vld [vmem:[#allocation3 + $0x48] sm:$0xff]
    %v135 = vld [vmem:[#allocation3 + $0x50] sm:$0xff]
    %v136 = vld [vmem:[#allocation3 + $0x58] sm:$0xff]
    %v137 = vld [vmem:[#allocation3 + $0x60] sm:$0xff]
    %v138 = vld [vmem:[#allocation3 + $0x68] sm:$0xff]
    %v139 = vld [vmem:[#allocation3 + $0x70] sm:$0xff]
    %v140 = vld [vmem:[#allocation3 + $0x78] sm:$0xff]
    %v141 = vpack.c.bf16 %v126, %v125
    %v142 = vpack.c.bf16 %v128, %v127
    %v143 = vpack.c.bf16 %v130, %v129
    %v144 = vpack.c.bf16 %v132, %v131
    %v145 = vpack.c.bf16 %v134, %v133
    %v146 = vpack.c.bf16 %v136, %v135
    %v147 = vpack.c.bf16 %v138, %v137
    %v148 = vpack.c.bf16 %v140, %v139
    %v149 = vld [vmem:[%s2] sm:$0xff]
    %v150 = vld [vmem:[%s2 + $0x8] sm:$0xff]
    %v151 = vld [vmem:[%s2 + $0x10] sm:$0xff]
    %v152 = vld [vmem:[%s2 + $0x18] sm:$0xff]
    %v153 = vld [vmem:[%s2 + $0x20] sm:$0xff]
    %v154 = vld [vmem:[%s2 + $0x28] sm:$0xff]
    %v155 = vld [vmem:[%s2 + $0x30] sm:$0xff]
    %v156 = vld [vmem:[%s2 + $0x38] sm:$0xff]
    %v157 = vld [vmem:[%s2 + $0x40] sm:$0xff]
    %v158 = vld [vmem:[%s2 + $0x48] sm:$0xff]
    %v159 = vld [vmem:[%s2 + $0x50] sm:$0xff]
    %v160 = vld [vmem:[%s2 + $0x58] sm:$0xff]
    %v161 = vld [vmem:[%s2 + $0x60] sm:$0xff]
    %v162 = vld [vmem:[%s2 + $0x68] sm:$0xff]
    %v163 = vld [vmem:[%s2 + $0x70] sm:$0xff]
    %v164 = vld [vmem:[%s2 + $0x78] sm:$0xff]
    %166 = vset.pattern.permute.xlu0 0
    %167 = vperm.xlu0 %166, %v149
    %v168 = vpop.permute.xlu0 %167
    %171 = vset.pattern.permute.xlu0 0
    %172 = vperm.xlu0 %171, %v150
    %v173 = vpop.permute.xlu0 %172
    %176 = vset.pattern.permute.xlu0 0
    %177 = vperm.xlu0 %176, %v151
    %v178 = vpop.permute.xlu0 %177
    %181 = vset.pattern.permute.xlu0 0
    %182 = vperm.xlu0 %181, %v152
    %v183 = vpop.permute.xlu0 %182
    %186 = vset.pattern.permute.xlu0 0
    %187 = vperm.xlu0 %186, %v153
    %v188 = vpop.permute.xlu0 %187
    %191 = vset.pattern.permute.xlu0 0
    %192 = vperm.xlu0 %191, %v154
    %v193 = vpop.permute.xlu0 %192
    %196 = vset.pattern.permute.xlu0 0
    %197 = vperm.xlu0 %196, %v155
    %v198 = vpop.permute.xlu0 %197
    %201 = vset.pattern.permute.xlu0 0
    %202 = vperm.xlu0 %201, %v156
    %v203 = vpop.permute.xlu0 %202
    %206 = vset.pattern.permute.xlu0 0
    %207 = vperm.xlu0 %206, %v157
    %v208 = vpop.permute.xlu0 %207
    %211 = vset.pattern.permute.xlu0 0
    %212 = vperm.xlu0 %211, %v158
    %v213 = vpop.permute.xlu0 %212
    %216 = vset.pattern.permute.xlu0 0
    %217 = vperm.xlu0 %216, %v159
    %v218 = vpop.permute.xlu0 %217
    %221 = vset.pattern.permute.xlu0 0
    %222 = vperm.xlu0 %221, %v160
    %v223 = vpop.permute.xlu0 %222
    %226 = vset.pattern.permute.xlu0 0
    %227 = vperm.xlu0 %226, %v161
    %v228 = vpop.permute.xlu0 %227
    %231 = vset.pattern.permute.xlu0 0
    %232 = vperm.xlu0 %231, %v162
    %v233 = vpop.permute.xlu0 %232
    %236 = vset.pattern.permute.xlu0 0
    %237 = vperm.xlu0 %236, %v163
    %v238 = vpop.permute.xlu0 %237
    %241 = vset.pattern.permute.xlu0 0
    %242 = vperm.xlu0 %241, %v164
    %v243 = vpop.permute.xlu0 %242
    %245 = vmatprep.subr.bf16.mxu0 0
    %246 = vmatpush1.bf16.xpose.msra.mxu0 %v116
    %247 = vmatprep.subr.bf16.mxu0 0
    %248 = vmatpush1.bf16.xpose.msra.mxu0 %v115
    %249 = vmatprep.subr.bf16.mxu0 0
    %250 = vmatpush1.bf16.xpose.msra.mxu0 %v114
    %251 = vmatprep.subr.bf16.mxu0 0
    %252 = vmatpush1.bf16.xpose.msra.mxu0 %v113
    %253 = vmatprep.subr.bf16.mxu0 0
    %254 = vmatpush1.bf16.xpose.msra.mxu0 %v112
    %255 = vmatprep.subr.bf16.mxu0 0
    %256 = vmatpush1.bf16.xpose.msra.mxu0 %v111
    %257 = vmatprep.subr.bf16.mxu0 0
    %258 = vmatpush1.bf16.xpose.msra.mxu0 %v110
    %259 = vmatprep.subr.bf16.mxu0 0
    %260 = vmatpush1.bf16.xpose.msra.mxu0 %v109
    %261 = vmatprep.subr.bf16.mxu0 0
    %262 = vmatpush2.bf16.xpose.msra.mxu0 %v124
    %263 = vmatprep.subr.bf16.mxu0 0
    %264 = vmatpush2.bf16.xpose.msra.mxu0 %v123
    %265 = vmatprep.subr.bf16.mxu0 0
    %266 = vmatpush2.bf16.xpose.msra.mxu0 %v122
    %267 = vmatprep.subr.bf16.mxu0 0
    %268 = vmatpush2.bf16.xpose.msra.mxu0 %v121
    %269 = vmatprep.subr.bf16.mxu0 0
    %270 = vmatpush2.bf16.xpose.msra.mxu0 %v120
    %271 = vmatprep.subr.bf16.mxu0 0
    %272 = vmatpush2.bf16.xpose.msra.mxu0 %v119
    %273 = vmatprep.subr.bf16.mxu0 0
    %274 = vmatpush2.bf16.xpose.msra.mxu0 %v118
    %275 = vmatprep.subr.bf16.mxu0 0
    %276 = vmatpush2.bf16.xpose.msra.mxu0 %v117
    %277 = vmatprep.mubr.bf16.mxu0 0
    %278 = vmatmul.mubr.bf16.gmra.mxu0 %v141
    %v279 = vpop.f32.mrf.mxu0
    %v280 = vadd.f32 %v168, %v279
    %v281 = vpop.f32.mrf.mxu0
    %v282 = vadd.f32 %v168, %v281
    %v283 = vpop.f32.mrf.mxu0
    %v284 = vadd.f32 %v173, %v283
    %v285 = vpop.f32.mrf.mxu0
    %v286 = vadd.f32 %v173, %v285
    %287 = vmatprep.mubr.bf16.mxu0 0
    %288 = vmatmul.mubr.bf16.gmra.mxu0 %v142
    %v289 = vpop.f32.mrf.mxu0
    %v290 = vadd.f32 %v178, %v289
    %v291 = vpop.f32.mrf.mxu0
    %v292 = vadd.f32 %v178, %v291
    %v293 = vpop.f32.mrf.mxu0
    %v294 = vadd.f32 %v183, %v293
    %v295 = vpop.f32.mrf.mxu0
    %v296 = vadd.f32 %v183, %v295
    %297 = vmatprep.mubr.bf16.mxu0 0
    %298 = vmatmul.mubr.bf16.gmra.mxu0 %v143
    %v299 = vpop.f32.mrf.mxu0
    %v300 = vadd.f32 %v188, %v299
    %v301 = vpop.f32.mrf.mxu0
    %v302 = vadd.f32 %v188, %v301
    %v303 = vpop.f32.mrf.mxu0
    %v304 = vadd.f32 %v193, %v303
    %v305 = vpop.f32.mrf.mxu0
    %v306 = vadd.f32 %v193, %v305
    %307 = vmatprep.mubr.bf16.mxu0 0
    %308 = vmatmul.mubr.bf16.gmra.mxu0 %v144
    %v309 = vpop.f32.mrf.mxu0
    %v310 = vadd.f32 %v198, %v309
    %v311 = vpop.f32.mrf.mxu0
    %v312 = vadd.f32 %v198, %v311
    %v313 = vpop.f32.mrf.mxu0
    %v314 = vadd.f32 %v203, %v313
    %v315 = vpop.f32.mrf.mxu0
    %v316 = vadd.f32 %v203, %v315
    %317 = vmatprep.mubr.bf16.mxu0 0
    %318 = vmatmul.mubr.bf16.gmra.mxu0 %v145
    %v319 = vpop.f32.mrf.mxu0
    %v320 = vadd.f32 %v208, %v319
    %v321 = vpop.f32.mrf.mxu0
    %v322 = vadd.f32 %v208, %v321
    %v323 = vpop.f32.mrf.mxu0
    %v324 = vadd.f32 %v213, %v323
    %v325 = vpop.f32.mrf.mxu0
    %v326 = vadd.f32 %v213, %v325
    %327 = vmatprep.mubr.bf16.mxu0 0
    %328 = vmatmul.mubr.bf16.gmra.mxu0 %v146
    %v329 = vpop.f32.mrf.mxu0
    %v330 = vadd.f32 %v218, %v329
    %v331 = vpop.f32.mrf.mxu0
    %v332 = vadd.f32 %v218, %v331
    %v333 = vpop.f32.mrf.mxu0
    %v334 = vadd.f32 %v223, %v333
    %v335 = vpop.f32.mrf.mxu0
    %v336 = vadd.f32 %v223, %v335
    %337 = vmatprep.mubr.bf16.mxu0 0
    %338 = vmatmul.mubr.bf16.gmra.mxu0 %v147
    %v339 = vpop.f32.mrf.mxu0
    %v340 = vadd.f32 %v228, %v339
    %v341 = vpop.f32.mrf.mxu0
    %v342 = vadd.f32 %v228, %v341
    %v343 = vpop.f32.mrf.mxu0
    %v344 = vadd.f32 %v233, %v343
    %v345 = vpop.f32.mrf.mxu0
    %v346 = vadd.f32 %v233, %v345
    %347 = vmatprep.mubr.bf16.mxu0 0
    %348 = vmatmul.mubr.bf16.gmra.mxu0 %v148
    %v349 = vpop.f32.mrf.mxu0
    %v350 = vadd.f32 %v238, %v349
    %v351 = vpop.f32.mrf.mxu0
    %v352 = vadd.f32 %v238, %v351
    %v353 = vpop.f32.mrf.mxu0
    %v354 = vadd.f32 %v243, %v353
    %v355 = vpop.f32.mrf.mxu0
    %v356 = vadd.f32 %v243, %v355
    %357 = vdwg.mxu0
    %v358 = vmul.f32 %v280, 0.2
    %v359 = vmul.f32 %v282, 0.2
    %v360 = vmul.f32 %v284, 0.2
    %v361 = vmul.f32 %v286, 0.2
    %v362 = vmul.f32 %v290, 0.2
    %v363 = vmul.f32 %v292, 0.2
    %v364 = vmul.f32 %v294, 0.2
    %v365 = vmul.f32 %v296, 0.2
    %v366 = vmul.f32 %v300, 0.2
    %v367 = vmul.f32 %v302, 0.2
    %v368 = vmul.f32 %v304, 0.2
    %v369 = vmul.f32 %v306, 0.2
    %v370 = vmul.f32 %v310, 0.2
    %v371 = vmul.f32 %v312, 0.2
    %v372 = vmul.f32 %v314, 0.2
    %v373 = vmul.f32 %v316, 0.2
    %v374 = vmul.f32 %v320, 0.2
    %v375 = vmul.f32 %v322, 0.2
    %v376 = vmul.f32 %v324, 0.2
    %v377 = vmul.f32 %v326, 0.2
    %v378 = vmul.f32 %v330, 0.2
    %v379 = vmul.f32 %v332, 0.2
    %v380 = vmul.f32 %v334, 0.2
    %v381 = vmul.f32 %v336, 0.2
    %v382 = vmul.f32 %v340, 0.2
    %v383 = vmul.f32 %v342, 0.2
    %v384 = vmul.f32 %v344, 0.2
    %v385 = vmul.f32 %v346, 0.2
    %v386 = vmul.f32 %v350, 0.2
    %v387 = vmul.f32 %v352, 0.2
    %v388 = vmul.f32 %v354, 0.2
    %v389 = vmul.f32 %v356, 0.2
    %v390 = vmax.f32 %v280, %v358
    %v391 = vmax.f32 %v282, %v359
    %v392 = vmax.f32 %v284, %v360
    %v393 = vmax.f32 %v286, %v361
    %v394 = vmax.f32 %v290, %v362
    %v395 = vmax.f32 %v292, %v363
    %v396 = vmax.f32 %v294, %v364
    %v397 = vmax.f32 %v296, %v365
    %v398 = vmax.f32 %v300, %v366
    %v399 = vmax.f32 %v302, %v367
    %v400 = vmax.f32 %v304, %v368
    %v401 = vmax.f32 %v306, %v369
    %v402 = vmax.f32 %v310, %v370
    %v403 = vmax.f32 %v312, %v371
    %v404 = vmax.f32 %v314, %v372
    %v405 = vmax.f32 %v316, %v373
    %v406 = vmax.f32 %v320, %v374
    %v407 = vmax.f32 %v322, %v375
    %v408 = vmax.f32 %v324, %v376
    %v409 = vmax.f32 %v326, %v377
    %v410 = vmax.f32 %v330, %v378
    %v411 = vmax.f32 %v332, %v379
    %v412 = vmax.f32 %v334, %v380
    %v413 = vmax.f32 %v336, %v381
    %v414 = vmax.f32 %v340, %v382
    %v415 = vmax.f32 %v342, %v383
    %v416 = vmax.f32 %v344, %v384
    %v417 = vmax.f32 %v346, %v385
    %v418 = vmax.f32 %v350, %v386
    %v419 = vmax.f32 %v352, %v387
    %v420 = vmax.f32 %v354, %v388
    %v421 = vmax.f32 %v356, %v389
    %v422 = vld [vmem:[#allocation6] sm:$0xff]
    %v423 = vld [vmem:[#allocation6 + $0x8] sm:$0xff]
    %v424 = vld [vmem:[#allocation6 + $0x10] sm:$0xff]
    %v425 = vld [vmem:[#allocation6 + $0x18] sm:$0xff]
    %v426 = vld [vmem:[#allocation6 + $0x20] sm:$0xff]
    %v427 = vld [vmem:[#allocation6 + $0x28] sm:$0xff]
    %v428 = vld [vmem:[#allocation6 + $0x30] sm:$0xff]
    %v429 = vld [vmem:[#allocation6 + $0x38] sm:$0xff]
    %v430 = vpack.c.bf16 %v423, %v422
    %v431 = vpack.c.bf16 %v425, %v424
    %v432 = vpack.c.bf16 %v427, %v426
    %v433 = vpack.c.bf16 %v429, %v428
    %v434 = vpack.c.bf16 %v392, %v390
    %v435 = vpack.c.bf16 %v393, %v391
    %v436 = vpack.c.bf16 %v396, %v394
    %v437 = vpack.c.bf16 %v397, %v395
    %v438 = vpack.c.bf16 %v400, %v398
    %v439 = vpack.c.bf16 %v401, %v399
    %v440 = vpack.c.bf16 %v404, %v402
    %v441 = vpack.c.bf16 %v405, %v403
    %v442 = vpack.c.bf16 %v408, %v406
    %v443 = vpack.c.bf16 %v409, %v407
    %v444 = vpack.c.bf16 %v412, %v410
    %v445 = vpack.c.bf16 %v413, %v411
    %v446 = vpack.c.bf16 %v416, %v414
    %v447 = vpack.c.bf16 %v417, %v415
    %v448 = vpack.c.bf16 %v420, %v418
    %v449 = vpack.c.bf16 %v421, %v419
    %v450 = vld [vmem:[%s4] sm:$0xff]
    %v451 = vld [vmem:[%s4 + $0x8] sm:$0xff]
    %v452 = vld [vmem:[%s4 + $0x10] sm:$0xff]
    %v453 = vld [vmem:[%s4 + $0x18] sm:$0xff]
    %v454 = vld [vmem:[%s4 + $0x20] sm:$0xff]
    %v455 = vld [vmem:[%s4 + $0x28] sm:$0xff]
    %v456 = vld [vmem:[%s4 + $0x30] sm:$0xff]
    %v457 = vld [vmem:[%s4 + $0x38] sm:$0xff]
    %459 = vset.pattern.permute.xlu0 0
    %460 = vperm.xlu0 %459, %v450
    %v461 = vpop.permute.xlu0 %460
    %464 = vset.pattern.permute.xlu0 0
    %465 = vperm.xlu0 %464, %v451
    %v466 = vpop.permute.xlu0 %465
    %469 = vset.pattern.permute.xlu0 0
    %470 = vperm.xlu0 %469, %v452
    %v471 = vpop.permute.xlu0 %470
    %474 = vset.pattern.permute.xlu0 0
    %475 = vperm.xlu0 %474, %v453
    %v476 = vpop.permute.xlu0 %475
    %479 = vset.pattern.permute.xlu0 0
    %480 = vperm.xlu0 %479, %v454
    %v481 = vpop.permute.xlu0 %480
    %484 = vset.pattern.permute.xlu0 0
    %485 = vperm.xlu0 %484, %v455
    %v486 = vpop.permute.xlu0 %485
    %489 = vset.pattern.permute.xlu0 0
    %490 = vperm.xlu0 %489, %v456
    %v491 = vpop.permute.xlu0 %490
    %494 = vset.pattern.permute.xlu0 0
    %495 = vperm.xlu0 %494, %v457
    %v496 = vpop.permute.xlu0 %495
    %498 = vmatprep.subr.bf16.mxu0 %v449
    %499 = vmatpush1.bf16.msra.mxu0 %v448
    %500 = vmatprep.subr.bf16.mxu0 %v447
    %501 = vmatpush1.bf16.msra.mxu0 %v446
    %502 = vmatprep.subr.bf16.mxu0 %v445
    %503 = vmatpush1.bf16.msra.mxu0 %v444
    %504 = vmatprep.subr.bf16.mxu0 %v443
    %505 = vmatpush1.bf16.msra.mxu0 %v442
    %506 = vmatprep.subr.bf16.mxu0 %v441
    %507 = vmatpush1.bf16.msra.mxu0 %v440
    %508 = vmatprep.subr.bf16.mxu0 %v439
    %509 = vmatpush1.bf16.msra.mxu0 %v438
    %510 = vmatprep.subr.bf16.mxu0 %v437
    %511 = vmatpush1.bf16.msra.mxu0 %v436
    %512 = vmatprep.subr.bf16.mxu0 %v435
    %513 = vmatpush1.bf16.msra.mxu0 %v434
    %514 = vmatprep.subr.bf16.mxu0 0
    %515 = vmatpush2.bf16.msra.mxu0 0
    %516 = vmatprep.subr.bf16.mxu0 0
    %517 = vmatpush2.bf16.msra.mxu0 0
    %518 = vmatprep.subr.bf16.mxu0 0
    %519 = vmatpush2.bf16.msra.mxu0 0
    %520 = vmatprep.subr.bf16.mxu0 0
    %521 = vmatpush2.bf16.msra.mxu0 0
    %522 = vmatprep.subr.bf16.mxu0 0
    %523 = vmatpush2.bf16.msra.mxu0 0
    %524 = vmatprep.subr.bf16.mxu0 0
    %525 = vmatpush2.bf16.msra.mxu0 0
    %526 = vmatprep.subr.bf16.mxu0 0
    %527 = vmatpush2.bf16.msra.mxu0 0
    %528 = vmatprep.subr.bf16.mxu0 0
    %529 = vmatpush2.bf16.msra.mxu0 0
    %530 = vmatprep.mubr.bf16.mxu0 0
    %531 = vmatmul.mubr.bf16.gmra.mxu0 %v430
    %v532 = vpop.f32.mrf.mxu0
    %v533 = vadd.f32 %v461, %v532
    %v534 = vpop.f32.mrf.mxu0
    %v535 = vadd.f32 %v461, %v534
    %v536 = vpop.f32.mrf.mxu0
    %v537 = vadd.f32 %v466, %v536
    %v538 = vpop.f32.mrf.mxu0
    %v539 = vadd.f32 %v466, %v538
    %540 = vmatprep.mubr.bf16.mxu0 0
    %541 = vmatmul.mubr.bf16.gmra.mxu0 %v431
    %v542 = vpop.f32.mrf.mxu0
    %v543 = vadd.f32 %v471, %v542
    %v544 = vpop.f32.mrf.mxu0
    %v545 = vadd.f32 %v471, %v544
    %v546 = vpop.f32.mrf.mxu0
    %v547 = vadd.f32 %v476, %v546
    %v548 = vpop.f32.mrf.mxu0
    %v549 = vadd.f32 %v476, %v548
    %550 = vmatprep.mubr.bf16.mxu0 0
    %551 = vmatmul.mubr.bf16.gmra.mxu0 %v432
    %v552 = vpop.f32.mrf.mxu0
    %v553 = vadd.f32 %v481, %v552
    %v554 = vpop.f32.mrf.mxu0
    %v555 = vadd.f32 %v481, %v554
    %v556 = vpop.f32.mrf.mxu0
    %v557 = vadd.f32 %v486, %v556
    %v558 = vpop.f32.mrf.mxu0
    %v559 = vadd.f32 %v486, %v558
    %560 = vmatprep.mubr.bf16.mxu0 0
    %561 = vmatmul.mubr.bf16.gmra.mxu0 %v433
    %v562 = vpop.f32.mrf.mxu0
    %v563 = vadd.f32 %v491, %v562
    %v564 = vpop.f32.mrf.mxu0
    %v565 = vadd.f32 %v491, %v564
    %v566 = vpop.f32.mrf.mxu0
    %v567 = vadd.f32 %v496, %v566
    %v568 = vpop.f32.mrf.mxu0
    %v569 = vadd.f32 %v496, %v568
    %570 = vdwg.mxu0
    %v571 = vmul.f32 %v533, 0.2
    %v572 = vmul.f32 %v535, 0.2
    %v573 = vmul.f32 %v537, 0.2
    %v574 = vmul.f32 %v539, 0.2
    %v575 = vmul.f32 %v543, 0.2
    %v576 = vmul.f32 %v545, 0.2
    %v577 = vmul.f32 %v547, 0.2
    %v578 = vmul.f32 %v549, 0.2
    %v579 = vmul.f32 %v553, 0.2
    %v580 = vmul.f32 %v555, 0.2
    %v581 = vmul.f32 %v557, 0.2
    %v582 = vmul.f32 %v559, 0.2
    %v583 = vmul.f32 %v563, 0.2
    %v584 = vmul.f32 %v565, 0.2
    %v585 = vmul.f32 %v567, 0.2
    %v586 = vmul.f32 %v569, 0.2
    %v587 = vmax.f32 %v533, %v571
    %v588 = vmax.f32 %v535, %v572
    %v589 = vmax.f32 %v537, %v573
    %v590 = vmax.f32 %v539, %v574
    %v591 = vmax.f32 %v543, %v575
    %v592 = vmax.f32 %v545, %v576
    %v593 = vmax.f32 %v547, %v577
    %v594 = vmax.f32 %v549, %v578
    %v595 = vmax.f32 %v553, %v579
    %v596 = vmax.f32 %v555, %v580
    %v597 = vmax.f32 %v557, %v581
    %v598 = vmax.f32 %v559, %v582
    %v599 = vmax.f32 %v563, %v583
    %v600 = vmax.f32 %v565, %v584
    %v601 = vmax.f32 %v567, %v585
    %v602 = vmax.f32 %v569, %v586
    %v603 = vld [vmem:[#allocation8] sm:$0xff]
    %v604 = vld [vmem:[#allocation8 + $0x8] sm:$0xff]
    %v605 = vld [vmem:[#allocation8 + $0x10] sm:$0xff]
    %v606 = vld [vmem:[#allocation8 + $0x18] sm:$0xff]
    %v607 = vpack.c.bf16 %v604, %v603
    %v608 = vpack.c.bf16 %v606, %v605
    %v609 = vpack.c.bf16 %v589, %v587
    %v610 = vpack.c.bf16 %v590, %v588
    %v611 = vpack.c.bf16 %v593, %v591
    %v612 = vpack.c.bf16 %v594, %v592
    %v613 = vpack.c.bf16 %v597, %v595
    %v614 = vpack.c.bf16 %v598, %v596
    %v615 = vpack.c.bf16 %v601, %v599
    %v616 = vpack.c.bf16 %v602, %v600
    %v617 = vld [vmem:[%s6] sm:$0xff]
    %v618 = vld [vmem:[%s6 + $0x8] sm:$0xff]
    %v619 = vld [vmem:[%s6 + $0x10] sm:$0xff]
    %v620 = vld [vmem:[%s6 + $0x18] sm:$0xff]
    %622 = vset.pattern.permute.xlu0 0
    %623 = vperm.xlu0 %622, %v617
    %v624 = vpop.permute.xlu0 %623
    %627 = vset.pattern.permute.xlu0 0
    %628 = vperm.xlu0 %627, %v618
    %v629 = vpop.permute.xlu0 %628
    %632 = vset.pattern.permute.xlu0 0
    %633 = vperm.xlu0 %632, %v619
    %v634 = vpop.permute.xlu0 %633
    %637 = vset.pattern.permute.xlu0 0
    %638 = vperm.xlu0 %637, %v620
    %v639 = vpop.permute.xlu0 %638
    %vm641 = vcmask 523264
    %v643 = vsel %vm641, %v607, 0
    %v646 = vsel %vm641, %v608, 0
    %648 = vmatprep.subr.bf16.mxu0 0
    %649 = vmatpush1.bf16.msra.mxu0 0
    %650 = vmatprep.subr.bf16.mxu0 0
    %651 = vmatpush1.bf16.msra.mxu0 0
    %652 = vmatprep.subr.bf16.mxu0 0
    %653 = vmatpush1.bf16.msra.mxu0 0
    %654 = vmatprep.subr.bf16.mxu0 0
    %655 = vmatpush1.bf16.msra.mxu0 0
    %656 = vmatprep.subr.bf16.mxu0 %v616
    %657 = vmatpush1.bf16.msra.mxu0 %v615
    %658 = vmatprep.subr.bf16.mxu0 %v614
    %659 = vmatpush1.bf16.msra.mxu0 %v613
    %660 = vmatprep.subr.bf16.mxu0 %v612
    %661 = vmatpush1.bf16.msra.mxu0 %v611
    %662 = vmatprep.subr.bf16.mxu0 %v610
    %663 = vmatpush1.bf16.msra.mxu0 %v609
    %664 = vmatprep.subr.bf16.mxu0 0
    %665 = vmatpush2.bf16.msra.mxu0 0
    %666 = vmatprep.subr.bf16.mxu0 0
    %667 = vmatpush2.bf16.msra.mxu0 0
    %668 = vmatprep.subr.bf16.mxu0 0
    %669 = vmatpush2.bf16.msra.mxu0 0
    %670 = vmatprep.subr.bf16.mxu0 0
    %671 = vmatpush2.bf16.msra.mxu0 0
    %672 = vmatprep.subr.bf16.mxu0 0
    %673 = vmatpush2.bf16.msra.mxu0 0
    %674 = vmatprep.subr.bf16.mxu0 0
    %675 = vmatpush2.bf16.msra.mxu0 0
    %676 = vmatprep.subr.bf16.mxu0 0
    %677 = vmatpush2.bf16.msra.mxu0 0
    %678 = vmatprep.subr.bf16.mxu0 0
    %679 = vmatpush2.bf16.msra.mxu0 0
    %680 = vmatprep.mubr.bf16.mxu0 0
    %681 = vmatmul.mubr.bf16.gmra.mxu0 %v643
    %v682 = vpop.f32.mrf.mxu0
    %v683 = vadd.f32 %v624, %v682
    %v684 = vpop.f32.mrf.mxu0
    %v685 = vadd.f32 %v624, %v684
    %v686 = vpop.f32.mrf.mxu0
    %v687 = vadd.f32 %v629, %v686
    %v688 = vpop.f32.mrf.mxu0
    %v689 = vadd.f32 %v629, %v688
    %690 = vmatprep.mubr.bf16.mxu0 0
    %691 = vmatmul.mubr.bf16.gmra.mxu0 %v646
    %v692 = vpop.f32.mrf.mxu0
    %v693 = vadd.f32 %v634, %v692
    %v694 = vpop.f32.mrf.mxu0
    %v695 = vadd.f32 %v634, %v694
    %v696 = vpop.f32.mrf.mxu0
    %v697 = vadd.f32 %v639, %v696
    %v698 = vpop.f32.mrf.mxu0
    %v699 = vadd.f32 %v639, %v698
    %700 = vdwg.mxu0
    %v701 = vmul.f32 %v683, 0.2
    %v702 = vmul.f32 %v685, 0.2
    %v703 = vmul.f32 %v687, 0.2
    %v704 = vmul.f32 %v689, 0.2
    %v705 = vmul.f32 %v693, 0.2
    %v706 = vmul.f32 %v695, 0.2
    %v707 = vmul.f32 %v697, 0.2
    %v708 = vmul.f32 %v699, 0.2
    %v709 = vmax.f32 %v683, %v701
    %v710 = vmax.f32 %v685, %v702
    %v711 = vmax.f32 %v687, %v703
    %v712 = vmax.f32 %v689, %v704
    %v713 = vmax.f32 %v693, %v705
    %v714 = vmax.f32 %v695, %v706
    %v715 = vmax.f32 %v697, %v707
    %v716 = vmax.f32 %v699, %v708
    %v717 = vld [vmem:[%s7] sm:$0xff]
    %v718 = vld [vmem:[%s7 + $0x8] sm:$0xff]
    %v719 = vld [vmem:[%s7 + $0x10] sm:$0xff]
    %v720 = vld [vmem:[%s7 + $0x18] sm:$0xff]
    %722 = vset.pattern.permute.xlu0 0
    %723 = vperm.xlu0 %722, %v717
    %v724 = vpop.permute.xlu0 %723
    %727 = vset.pattern.permute.xlu0 0
    %728 = vperm.xlu0 %727, %v718
    %v729 = vpop.permute.xlu0 %728
    %732 = vset.pattern.permute.xlu0 0
    %733 = vperm.xlu0 %732, %v719
    %v734 = vpop.permute.xlu0 %733
    %737 = vset.pattern.permute.xlu0 0
    %738 = vperm.xlu0 %737, %v720
    %v739 = vpop.permute.xlu0 %738
    %v741 = vmul.f32 %v709, %v724
    %v742 = vmul.f32 %v710, %v724
    %v743 = vmul.f32 %v711, %v729
    %v744 = vmul.f32 %v712, %v729
    %v745 = vmul.f32 %v713, %v734
    %v746 = vmul.f32 %v714, %v734
    %v747 = vmul.f32 %v715, %v739
    %v748 = vmul.f32 %v716, %v739
    %v749 = vadd.f32 %v741, %v743
    %v750 = vadd.f32 %v749, %v745
    %v751 = vadd.f32 %v750, %v747
    %v752 = vrot.slane %v751, 4
    %v753 = vadd.f32 %v751, %v752
    %v754 = vrot.slane %v753, 2
    %v755 = vadd.f32 %v753, %v754
    %v756 = vrot.slane %v755, 1
    %v757 = vadd.f32 %v755, %v756
    %v758 = vadd.f32 %v742, %v744
    %v759 = vadd.f32 %v758, %v746
    %v760 = vadd.f32 %v759, %v748
    %v761 = vrot.slane %v760, 4
    %v762 = vadd.f32 %v760, %v761
    %v763 = vrot.slane %v762, 2
    %v764 = vadd.f32 %v762, %v763
    %v765 = vrot.slane %v764, 1
    %v766 = vadd.f32 %v764, %v765
    %v767 = vld [vmem:[#allocation2] sm:$0x1]
    %769 = vset.pattern.permute.xlu0 0
    %770 = vperm.xlu0 %769, %v767
    %v771 = vpop.permute.xlu0 %770
    %v773 = vlaneseq
    %v774 = vshrl.u32 %v773, 7
    %v775 = vsub.s32 0, %v774
    %v776 = vrot.slane %v771, %v775
    %v777 = vadd.f32 %v757, %v776
    %v778 = vadd.f32 %v766, %v776
    %v779 = vsub.f32 0.0, %v777
    %v780 = vsub.f32 0.0, %v778
    %v781 = vmul.f32 %v779, 1.442695
    %v782 = vpow.pop %v781
    %v783 = vmul.f32 %v780, 1.442695
    %v784 = vpow.pop %v783
    %v785 = vadd.f32 %v782, 1.0
    %v786 = vadd.f32 %v784, 1.0
    %v787 = vrcp.pop %v785
    %v788 = vrcp.pop %v786
    %v791 = vcombine.low %v787, %v788
    %v793 = vunpack.c.l.s4 1966171168
    %v794 = vunpack.c.0.s8 %v793
    %v795 = vlaneseq
    %v796 = vshrl.u32 %v795, 7
    %v797 = vsub.s32 %v794, %v796
    %v798 = vrot.slane %v791, %v797
    %v800 = vunpack.c.l.s4 1966171168
    %v801 = vunpack.c.0.s8 %v800
    %v802 = vlaneseq
    %v803 = vshrl.u32 %v802, 7
    %v804 = vsub.s32 %v801, %v803
    %v805 = vrot.slane %v798, %v804
    %v807 = vlaneseq
    %vm808 = vcmp.ge.s32.totalorder %v807, 0
    %vm809 = vcmp.lt.s32.totalorder %v807, 256
    %vm810 = vmand %vm808, %vm809
    %811 = vst.msk [vmem:[#allocation9] sm:$0x3] %vm810, %v805
    // Predicated region
    $region50: #{tpu_custom_call.1} parent=1 // pred_check
      _
    $region51: #{tpu_custom_call.1} parent=1 // pred_check_branch
      %813 = sbr.rel (0) target = $region53
    $region52: #{tpu_custom_call.1} parent=1 // pred_region
      %s815 = ssub.s32 32, 32
      %816 = vsyncadd [#allocation5], %s815
      %s818 = sshll.u32 [#allocation9], 4
      %s819 = int_to_ptr.vmem [resolvable:$true] %s818
      %821 = dma.vmem_to_hbm [thread:$0]  %s819, 32, %s9, [#allocation5]
    $region53: #{tpu_custom_call.1} parent=1 // pred_fallthru
      _
    // Predicated region
    $region54: #{tpu_custom_call.1} parent=1 // pred_check
      _
    $region55: #{tpu_custom_call.1} parent=1 // pred_check_branch
      %823 = sbr.rel (0) target = $region57
    $region56: #{tpu_custom_call.1} parent=1 // pred_region
      %824 = dma.done [#allocation5], 32
    $region57: #{tpu_custom_call.1} parent=1 // pred_fallthru
      _
    %825 = vsyncpa [#allocation4], 1
    %826 = vsyncpa [#allocation7], 1
    %827 = vsyncpa [#allocation5], 1

</llo_original>
